<compile_context>
chip_gen: v7x
topology: tpu7x:2x2x1
jax: 0.10.0
libtpu: 0.0.40
codegen_flags: <defaults>
</compile_context>

<pallas_src>
import functools

import jax
import jax.numpy as jnp
import numpy as np
from jax.experimental import pallas as pl
from jax.experimental.pallas import tpu as pltpu


def _round_up(x, m):
    return ((x + m - 1) // m) * m


def _ensemble_kernel_f32out(x_ref, w_ref, mb_ref, o_ref, *, inv_e):
    """f32 output: accumulate directly into the resident output block."""
    e = pl.program_id(2)

    @pl.when(e == 0)
    def _():
        o_ref[...] = jnp.zeros_like(o_ref)

    o_ref[...] += jnp.dot(x_ref[...], w_ref[...],
                          preferred_element_type=jnp.float32)

    @pl.when(e == pl.num_programs(2) - 1)
    def _():
        o_ref[...] = o_ref[...] * inv_e + mb_ref[...]


def _ensemble_kernel_acc(x_ref, w_ref, mb_ref, o_ref, acc_ref, *, inv_e):
    """Generic output dtype: f32 VMEM accumulator, cast on the last step."""
    e = pl.program_id(2)

    @pl.when(e == 0)
    def _():
        acc_ref[...] = jnp.zeros_like(acc_ref)

    acc_ref[...] += jnp.dot(x_ref[...], w_ref[...],
                            preferred_element_type=jnp.float32)

    @pl.when(e == pl.num_programs(2) - 1)
    def _():
        o_ref[...] = (acc_ref[...] * inv_e + mb_ref[...]).astype(o_ref.dtype)


def tr_ensemble_forward(x, weights, biases, *, tm=128, tn=256,
                        compute_dtype=jnp.bfloat16):
    """x: (B, D_in), weights: (E, D_in, D_out), biases: (E, 1, D_out)."""
    B, D_in = x.shape
    E, D_in_w, D_out = weights.shape
    assert D_in_w == D_in

    # ---- lane-dense padding / tile selection ----
    B_p = _round_up(B, 8)
    D_out_p = _round_up(D_out, 128)
    tm = min(tm, B_p)
    tn = min(tn, D_out_p)
    B_p = _round_up(B_p, tm)
    D_out_p = _round_up(D_out_p, tn)

    x_p = jnp.pad(x, ((0, B_p - B), (0, 0))).astype(compute_dtype)
    w_p = jnp.pad(weights,
                  ((0, 0), (0, 0), (0, D_out_p - D_out))).astype(compute_dtype)
    # Fold the bias average once (tiny, done on host side of the kernel); keep f32.
    mean_b = jnp.mean(biases.astype(jnp.float32), axis=0)        # (1, D_out)
    mean_b_p = jnp.pad(mean_b, ((0, 0), (0, D_out_p - D_out)))   # (1, D_out_p)

    out_dtype = x.dtype
    inv_e = 1.0 / float(E)          # compile-time constant scale (no traced divide)
    grid = (B_p // tm, D_out_p // tn, E)

    in_specs = [
        # x tile: resident across the E axis
        pl.BlockSpec((tm, D_in), lambda i, j, e: (i, 0)),
        # per-model weight slab, leading E dim squeezed away
        pl.BlockSpec((pl.Squeezed(), D_in, tn), lambda i, j, e: (e, 0, j)),
        # mean bias (f32)
        pl.BlockSpec((1, tn), lambda i, j, e: (0, j)),
    ]
    out_specs = pl.BlockSpec((tm, tn), lambda i, j, e: (i, j))

    accumulate_in_output = (out_dtype == jnp.float32)
    if accumulate_in_output:
        kernel = functools.partial(_ensemble_kernel_f32out, inv_e=inv_e)
        scratch_shapes = []
    else:
        kernel = functools.partial(_ensemble_kernel_acc, inv_e=inv_e)
        scratch_shapes = [pltpu.VMEM((tm, tn), jnp.float32)]

    itemsize = jnp.dtype(compute_dtype).itemsize
    out_itemsize = jnp.dtype(out_dtype).itemsize
    vmem_bytes = (
        2 * tm * D_in * itemsize                      # x (double-buffered)
        + 2 * D_in * tn * itemsize                    # W_e (double-buffered)
        + 2 * tn * 4                                  # mean bias
        + 2 * tm * tn * out_itemsize                  # output tile
        + (0 if accumulate_in_output else tm * tn * 4)  # scratch accumulator
    )
    # Leave headroom; stay within v7x's 64 MiB physical VMEM.
    vmem_limit = int(min(max(int(vmem_bytes * 1.5), 32 * 1024 * 1024),
                         64 * 1024 * 1024))

    out_p = pl.pallas_call(
        kernel,
        out_shape=jax.ShapeDtypeStruct((B_p, D_out_p), out_dtype),
        grid_spec=pltpu.PrefetchScalarGridSpec(
            num_scalar_prefetch=0,
            grid=grid,
            in_specs=in_specs,
            out_specs=out_specs,
            scratch_shapes=scratch_shapes,
        ),
        compiler_params=pltpu.CompilerParams(
            dimension_semantics=("parallel", "parallel", "arbitrary"),
            vmem_limit_bytes=vmem_limit,
        ),
        cost_estimate=pl.CostEstimate(
            flops=2 * B_p * D_in * D_out_p * E,
            transcendentals=0,
            bytes_accessed=(x_p.size * itemsize
                            + w_p.size * itemsize
                            + mean_b_p.size * 4
                            + B_p * D_out_p * out_itemsize),
        ),
    )(x_p, w_p, mean_b_p)

    return out_p[:B, :D_out]


if __name__ == "__main__":
    # small deterministic setup
    E = 4       # number of models in the ensemble
    B = 8       # batch
    D_in = 32   # input features
    D_out = 32  # output features

    key = jax.random.PRNGKey(0)
    kx, kw, kb = jax.random.split(key, 3)

    x = jax.random.normal(kx, (B, D_in), dtype=jnp.float32)
    weights = jax.random.normal(kw, (E, D_in, D_out), dtype=jnp.float32) * 0.1
    biases = jax.random.normal(kb, (E, 1, D_out), dtype=jnp.float32) * 0.1

    out = tr_ensemble_forward(x, weights, biases)
    out = jax.block_until_ready(out)

    # pure-JAX reference: torch.mean(torch.stack([m(x) for m in models]), dim=0)
    ref = jnp.mean(
        jnp.stack([x @ weights[e] + biases[e, 0] for e in range(E)], axis=0),
        axis=0,
    )
    # bf16 matmul inputs with f32 accumulation -> loosen tolerance accordingly
    np.testing.assert_allclose(np.asarray(out), np.asarray(ref),
                               rtol=2e-2, atol=2e-2)

    print("KERNEL_OK")
</pallas_src>

<mosaic_0001>
module attributes {stable_mosaic.version = 11 : i64} {
  func.func @_ensemble_kernel_f32out(%arg0: i32, %arg1: i32, %arg2: i32, %arg3: memref<8x32xbf16, #tpu.memory_space<vmem>>, %arg4: memref<1x32x128xbf16, #tpu.memory_space<vmem>>, %arg5: memref<1x128xf32, #tpu.memory_space<vmem>>, %arg6: memref<8x128xf32, #tpu.memory_space<vmem>>) attributes {dimension_semantics = [#tpu.dimension_semantics<parallel>, #tpu.dimension_semantics<parallel>, #tpu.dimension_semantics<arbitrary>], iteration_bounds = array<i64: 1, 1, 4>, scalar_prefetch = 0 : i64, scratch_operands = 0 : i64, tpu.core_type = #tpu.core_type<tc>, window_params = [{transform_indices = @transform_0, window_bounds = array<i64: 8, 32>}, {transform_indices = @transform_1, window_bounds = array<i64: 1, 32, 128>}, {transform_indices = @transform_2, window_bounds = array<i64: 1, 128>}, {transform_indices = @transform_3, window_bounds = array<i64: 8, 128>}]} {
    %c0_i32 = arith.constant 0 : i32
    %0 = arith.cmpi eq, %arg2, %c0_i32 : i32
    %1 = arith.extui %0 : i1 to i32
    %c0_i32_0 = arith.constant 0 : i32
    %2 = arith.cmpi ne, %1, %c0_i32_0 : i32
    scf.if %2 {
      %cst_10 = arith.constant 0.000000e+00 : f32
      %13 = vector.broadcast %cst_10 : f32 to vector<8x128xf32>
      %c0_11 = arith.constant 0 : index
      %c0_12 = arith.constant 0 : index
      %14 = vector.load %arg6[%c0_11, %c0_12] : memref<8x128xf32, #tpu.memory_space<vmem>>, vector<8x128xf32>
      tpu.vector_store %arg6[%c0_11, %c0_12], %13 {strides = array<i32>} : memref<8x128xf32, #tpu.memory_space<vmem>>, vector<8x128xf32>,
    } else {
    }
    %c0 = arith.constant 0 : index
    %c0_1 = arith.constant 0 : index
    %3 = vector.load %arg6[%c0, %c0_1] : memref<8x128xf32, #tpu.memory_space<vmem>>, vector<8x128xf32>
    %c0_2 = arith.constant 0 : index
    %c0_3 = arith.constant 0 : index
    %4 = vector.load %arg3[%c0_2, %c0_3] : memref<8x32xbf16, #tpu.memory_space<vmem>>, vector<8x32xbf16>
    %c0_4 = arith.constant 0 : index
    %c0_5 = arith.constant 0 : index
    %c0_6 = arith.constant 0 : index
    %5 = vector.load %arg4[%c0_4, %c0_5, %c0_6] : memref<1x32x128xbf16, #tpu.memory_space<vmem>>, vector<1x32x128xbf16>
    %6 = vector.shape_cast %5 : vector<1x32x128xbf16> to vector<32x128xbf16>
    %cst = arith.constant dense<0.000000e+00> : vector<8x128xf32>
    %7 = tpu.matmul %4, %6, %cst {dimension_numbers = #tpu.dot_dimension_numbers<[1], [0], [0], [1], [0, 0, 1, 1], [], []>} : vector<8x32xbf16>, vector<32x128xbf16>, vector<8x128xf32> -> vector<8x128xf32>
    %8 = arith.addf %3, %7 : vector<8x128xf32>
    %c0_7 = arith.constant 0 : index
    %c0_8 = arith.constant 0 : index
    %9 = vector.load %arg6[%c0_7, %c0_8] : memref<8x128xf32, #tpu.memory_space<vmem>>, vector<8x128xf32>
    tpu.vector_store %arg6[%c0_7, %c0_8], %8 {strides = array<i32>} : memref<8x128xf32, #tpu.memory_space<vmem>>, vector<8x128xf32>,
    %c3_i32 = arith.constant 3 : i32
    %10 = arith.cmpi eq, %arg2, %c3_i32 : i32
    %11 = arith.extui %10 : i1 to i32
    %c0_i32_9 = arith.constant 0 : i32
    %12 = arith.cmpi ne, %11, %c0_i32_9 : i32
    scf.if %12 {
      %c0_10 = arith.constant 0 : index
      %c0_11 = arith.constant 0 : index
      %13 = vector.load %arg6[%c0_10, %c0_11] : memref<8x128xf32, #tpu.memory_space<vmem>>, vector<8x128xf32>
      %cst_12 = arith.constant 2.500000e-01 : f32
      %14 = vector.broadcast %cst_12 : f32 to vector<8x128xf32>
      %15 = arith.mulf %13, %14 : vector<8x128xf32>
      %c0_13 = arith.constant 0 : index
      %c0_14 = arith.constant 0 : index
      %16 = vector.load %arg5[%c0_13, %c0_14] : memref<1x128xf32, #tpu.memory_space<vmem>>, vector<1x128xf32>
      %17 = vector.broadcast %16 : vector<1x128xf32> to vector<8x128xf32>
      %18 = arith.addf %15, %17 : vector<8x128xf32>
      %c0_15 = arith.constant 0 : index
      %c0_16 = arith.constant 0 : index
      %19 = vector.load %arg6[%c0_15, %c0_16] : memref<8x128xf32, #tpu.memory_space<vmem>>, vector<8x128xf32>
      tpu.vector_store %arg6[%c0_15, %c0_16], %18 {strides = array<i32>} : memref<8x128xf32, #tpu.memory_space<vmem>>, vector<8x128xf32>,
    } else {
    }
    return
  }
  func.func @transform_0(%arg0: i32, %arg1: i32, %arg2: i32) -> (i32, i32) {
    %c0_i32 = arith.constant 0 : i32
    %c0_i32_0 = arith.constant 0 : i32
    return %arg0, %c0_i32 : i32, i32
  }
  func.func @transform_1(%arg0: i32, %arg1: i32, %arg2: i32) -> (i32, i32, i32) {
    %c0_i32 = arith.constant 0 : i32
    %c0_i32_0 = arith.constant 0 : i32
    return %arg2, %c0_i32, %arg1 : i32, i32, i32
  }
  func.func @transform_2(%arg0: i32, %arg1: i32, %arg2: i32) -> (i32, i32) {
    %c0_i32 = arith.constant 0 : i32
    %c0_i32_0 = arith.constant 0 : i32
    return %c0_i32, %arg1 : i32, i32
  }
  func.func @transform_3(%arg0: i32, %arg1: i32, %arg2: i32) -> (i32, i32) {
    %c0_i32 = arith.constant 0 : i32
    return %arg0, %arg1 : i32, i32
  }
}

</mosaic_0001>

<llo_original>
// kernel: tpu_custom_call.1
$region0: #{tpu_custom_call.1}
  #allocation0 [shape = 'u32[]', space=smem, size = 0x4, offset = 0x4, fixed_abs, tag = 'smem constant byte address 0x4 - core index']
  #allocation1 [shape = 'u32[144,128]{1,0:T(1,128)}', space=vmem, size = 0x12000, scoped, tag = 'internal scratch']
  %s0 = inlined_call_operand.hbm [shape: bf16[8,32], index: 0, kind: input, shape index: {}]
  %s1 = inlined_call_operand.hbm [shape: bf16[4,32,128], index: 1, kind: input, shape index: {}]
  %s2 = inlined_call_operand.vmem [shape: f32[1,128], index: 2, kind: input, shape index: {}]
  %s3 = inlined_call_operand.hbm [shape: f32[8,128], index: 3, kind: output, shape index: {}]
  %s4 = sld [smem:[#allocation0]]
  $region61: #{tpu_custom_call.1} parent=0
    _
  %s6 = ssub.s32 1, %s4
  %s7 = scalar_select 0, %s6, %s4
  $region1: #{tpu_custom_call.1} parent=0
    #allocation2 [shape = 'u8[2048]{0}', space=vmem, size = 0x800, scoped, tag = 'input window, operand 0, single buffered']
    #allocation3 [shape = 's32[2]{0}', space=sflag, size = 0x8, scoped, tag = 'scoped memory for tpu_custom_call.1']
    #allocation4 [shape = 's32[2]{0}', space=sflag, size = 0x8, scoped, tag = 'scoped memory for tpu_custom_call.1']
    #allocation5 [shape = 'u8[16384]{0}', space=vmem, size = 0x4000, scoped, tag = 'input window, operand 1']
    #allocation6 [shape = 's32[2]{0}', space=sflag, size = 0x8, scoped, tag = 'scoped memory for tpu_custom_call.1']
    #allocation7 [shape = 'u8[4096]{0}', space=vmem, size = 0x1000, scoped, tag = 'output window, operand 0, single buffered']
    %8 = vsyncpa [#allocation3], 0
    %9 = vsyncpa [#allocation6], 0
    %s10 = scalar_lea.sflag [#allocation6], 1
    %11 = vsyncpa %s10, 0
    %12 = vsyncpa [#allocation4], 0
    loop: start=0, step=1, limit=6
    $region2: #{tpu_custom_call.1} parent=1 // loop_pre_header
      _
    $region3: #{tpu_custom_call.1} parent=1 // loop_header
      %s14 = sphi 0, %s18
      %p15 = scmp.ge.s32.totalorder %s14, 6
      %s21 = sphi 0, %s40
      %s22 = sphi 0, %s36
      %s23 = sphi 0, %s32
      %s24 = sphi 0, %s21
      %s25 = sphi 0, %s22
      %s26 = sphi 0, %s23
      %s27 = sphi 0, %s24
      %s28 = sphi 0, %s25
      %s29 = sphi 0, %s26
      %s43 = sphi 0, %s45
      %s46 = sphi 0, %s43
      %s47 = sphi 0, %s46
      %s63 = sphi 0, %s47
      %s71 = sphi 0, %s73
      %s74 = sphi 0, %s71
      %s75 = sphi 0, %s74
      %s91 = sphi 0, %s75
      %s97 = sphi 0, %s99
      %s100 = sphi 0, %s97
      %s101 = sphi 0, %s100
      %s117 = sphi 0, %s101
      %s125 = sphi 0, %s127
      %s128 = sphi 0, %s125
      %s129 = sphi 0, %s128
      %s145 = sphi 0, %s129
    $region4: #{tpu_custom_call.1} parent=1 // loop_header_branch
      %17 = sbr.rel (%p15) target = $region8
    $region5: #{tpu_custom_call.1} parent=1 // loop_body
      %s19 = ssub.s32 %s14, 1
      %s20 = ssub.s32 %s14, 2
      %s30 = sadd.s32 1, %s23
      %p31 = scmp.ge.s32.totalorder %s30, 4
      %s32 = scalar_select %p31, 0, %s30
      %s33 = sadd.s32 1, %s22
      %s34 = scalar_select %p31, %s33, %s22
      %p35 = scmp.ge.s32.totalorder %s34, 1
      %s36 = scalar_select %p35, 0, %s34
      %s37 = sadd.s32 1, %s21
      %s38 = scalar_select %p35, %s37, %s21
      %p39 = scmp.ge.s32.totalorder %s38, 1
      %s40 = scalar_select %p39, 0, %s38
      %s41 = ssub.s32 %s21, %s40
      %p42 = scmp.eq.s32.totalorder %s41, 0
      %s44 = sadd.s32 %s43, 1
      %s45 = scalar_select %p42, %s43, %s44
      %p48 = pneg %p42
      %p49 = scmp.eq.s32.totalorder %s14, 3
      %p50 = por %p48, %p49
      %p51 = scmp.ne.s32.totalorder %s43, %s46
      %p52 = scmp.eq.s32.totalorder %s14, 0
      %p53 = por %p51, %p52
      %p54 = scmp.ne.s32.totalorder %s43, %s46
      %p55 = scmp.eq.s32.totalorder %s19, 3
      %p56 = por %p54, %p55
      %p57 = scmp.ne.s32.totalorder %s46, %s47
      %p58 = scmp.eq.s32.totalorder %s19, 0
      %p59 = por %p57, %p58
      %p60 = scmp.ne.s32.totalorder %s46, %s47
      %p61 = scmp.eq.s32.totalorder %s20, 3
      %p62 = por %p60, %p61
      %p64 = scmp.ne.s32.totalorder %s47, %s63
      %p65 = scmp.eq.s32.totalorder %s20, 0
      %p66 = por %p64, %p65
      %s67 = ssub.s32 %s23, %s32
      %s68 = ssub.s32 %s22, %s36
      %s69 = sor.u32 %s67, %s68
      %p70 = scmp.eq.s32.totalorder %s69, 0
      %s72 = sadd.s32 %s71, 1
      %s73 = scalar_select %p70, %s71, %s72
      %p76 = pneg %p70
      %p77 = scmp.eq.s32.totalorder %s14, 3
      %p78 = por %p76, %p77
      %p79 = scmp.ne.s32.totalorder %s71, %s74
      %p80 = scmp.eq.s32.totalorder %s14, 0
      %p81 = por %p79, %p80
      %p82 = scmp.ne.s32.totalorder %s71, %s74
      %p83 = scmp.eq.s32.totalorder %s19, 3
      %p84 = por %p82, %p83
      %p85 = scmp.ne.s32.totalorder %s74, %s75
      %p86 = scmp.eq.s32.totalorder %s19, 0
      %p87 = por %p85, %p86
      %p88 = scmp.ne.s32.totalorder %s74, %s75
      %p89 = scmp.eq.s32.totalorder %s20, 3
      %p90 = por %p88, %p89
      %p92 = scmp.ne.s32.totalorder %s75, %s91
      %p93 = scmp.eq.s32.totalorder %s20, 0
      %p94 = por %p92, %p93
      %s95 = ssub.s32 %s22, %s36
      %p96 = scmp.eq.s32.totalorder %s95, 0
      %s98 = sadd.s32 %s97, 1
      %s99 = scalar_select %p96, %s97, %s98
      %p102 = pneg %p96
      %p103 = scmp.eq.s32.totalorder %s14, 3
      %p104 = por %p102, %p103
      %p105 = scmp.ne.s32.totalorder %s97, %s100
      %p106 = scmp.eq.s32.totalorder %s14, 0
      %p107 = por %p105, %p106
      %p108 = scmp.ne.s32.totalorder %s97, %s100
      %p109 = scmp.eq.s32.totalorder %s19, 3
      %p110 = por %p108, %p109
      %p111 = scmp.ne.s32.totalorder %s100, %s101
      %p112 = scmp.eq.s32.totalorder %s19, 0
      %p113 = por %p111, %p112
      %p114 = scmp.ne.s32.totalorder %s100, %s101
      %p115 = scmp.eq.s32.totalorder %s20, 3
      %p116 = por %p114, %p115
      %p118 = scmp.ne.s32.totalorder %s101, %s117
      %p119 = scmp.eq.s32.totalorder %s20, 0
      %p120 = por %p118, %p119
      %s121 = ssub.s32 %s21, %s40
      %s122 = ssub.s32 %s22, %s36
      %s123 = sor.u32 %s121, %s122
      %p124 = scmp.eq.s32.totalorder %s123, 0
      %s126 = sadd.s32 %s125, 1
      %s127 = scalar_select %p124, %s125, %s126
      %p130 = pneg %p124
      %p131 = scmp.eq.s32.totalorder %s14, 3
      %p132 = por %p130, %p131
      %p133 = scmp.ne.s32.totalorder %s125, %s128
      %p134 = scmp.eq.s32.totalorder %s14, 0
      %p135 = por %p133, %p134
      %p136 = scmp.ne.s32.totalorder %s125, %s128
      %p137 = scmp.eq.s32.totalorder %s19, 3
      %p138 = por %p136, %p137
      %p139 = scmp.ne.s32.totalorder %s128, %s129
      %p140 = scmp.eq.s32.totalorder %s19, 0
      %p141 = por %p139, %p140
      %p142 = scmp.ne.s32.totalorder %s128, %s129
      %p143 = scmp.eq.s32.totalorder %s20, 3
      %p144 = por %p142, %p143
      %p146 = scmp.ne.s32.totalorder %s129, %s145
      %p147 = scmp.eq.s32.totalorder %s20, 0
      %p148 = por %p146, %p147
      %p149 = scmp.le.s32.totalorder 1, %s14
      %p150 = scmp.lt.s32.totalorder %s14, 5
      %p151 = pnand %p149, %p150
      %p152 = pneg %p151
      // Predicated region
      $region9: #{tpu_custom_call.1} parent=5 // pred_check
        _
      $region10: #{tpu_custom_call.1} parent=5 // pred_check_branch
        %154 = sbr.rel (%p151) target = $region12
      $region11: #{tpu_custom_call.1} parent=5 // pred_region
        %s155 = ssub.s32 %s14, 1
        // Predicated region
        $region13: #{tpu_custom_call.1} parent=11 // pred_check
          %p156 = pneg %p59
        $region14: #{tpu_custom_call.1} parent=11 // pred_check_branch
          %158 = sbr.rel (%p156) target = $region16
        $region15: #{tpu_custom_call.1} parent=11 // pred_region
          %s160 = ssub.s32 64, 64
          %161 = vsyncadd [#allocation3], %s160
          %s162 = smul.addr %s24, 64
          %s163 = scalar_lea.hbm %s0, %s162
          %s165 = sshll.u32 [#allocation2], 4
          %s166 = int_to_ptr.vmem [resolvable:$true] %s165
          %168 = dma.hbm_to_vmem [thread:$0]  %s163, 64, %s166, [#allocation3]
        $region16: #{tpu_custom_call.1} parent=11 // pred_fallthru
          _
        // Predicated region
        $region17: #{tpu_custom_call.1} parent=11 // pred_check
          %p169 = pneg %p113
        $region18: #{tpu_custom_call.1} parent=11 // pred_check_branch
          %171 = sbr.rel (%p169) target = $region20
        $region19: #{tpu_custom_call.1} parent=11 // pred_region
          %p172 = scmp.lt.s32.totalorder %s25, 0
          %s173 = scalar_select %p172, %s25, 0
          %s174 = scalar_lea.vmem %s2, %s173
        $region20: #{tpu_custom_call.1} parent=11 // pred_fallthru
          _
      $region12: #{tpu_custom_call.1} parent=5 // pred_fallthru
        _
      %p175 = scmp.lt.s32.totalorder %s14, 4
      // Predicated region
      $region21: #{tpu_custom_call.1} parent=5 // pred_check
        %p176 = pneg %p175
      $region22: #{tpu_custom_call.1} parent=5 // pred_check_branch
        %178 = sbr.rel (%p176) target = $region24
      $region23: #{tpu_custom_call.1} parent=5 // pred_region
        // Predicated region
        $region25: #{tpu_custom_call.1} parent=23 // pred_check
          %p179 = pneg %p81
        $region26: #{tpu_custom_call.1} parent=23 // pred_check_branch
          %181 = sbr.rel (%p179) target = $region28
        $region27: #{tpu_custom_call.1} parent=23 // pred_region
          %s182 = sand.u32 %s71, 1
          %s183 = scalar_lea.sflag [#allocation6], %s182
          %s184 = sand.u32 %s71, 1
          %s185 = smul.addr %s184, 16
          %s186 = scalar_lea.vmem [#allocation5], %s185
          %s188 = ssub.s32 256, 256
          %189 = vsyncadd %s183, %s188
          %s190 = smul.addr %s23, 4
          %s191 = sadd.s32 %s22, %s190
          %s192 = smul.addr %s191, 64
          %s193 = scalar_lea.hbm %s1, %s192
          %s194 = sshll.u32 %s186, 4
          %s195 = int_to_ptr.vmem [resolvable:$true] %s194
          %200 = dma.hbm_to_vmem [thread:$0]  %s193, 256, %s195, %s183, 64, 64, 4
        $region28: #{tpu_custom_call.1} parent=23 // pred_fallthru
          _
      $region24: #{tpu_custom_call.1} parent=5 // pred_fallthru
        _
      %p201 = scmp.le.s32.totalorder 1, %s14
      %p202 = scmp.lt.s32.totalorder %s14, 5
      %p203 = pnand %p201, %p202
      %p204 = pneg %p203
      // Predicated region
      $region29: #{tpu_custom_call.1} parent=5 // pred_check
        _
      $region30: #{tpu_custom_call.1} parent=5 // pred_check_branch
        %206 = sbr.rel (%p203) target = $region32
      $region31: #{tpu_custom_call.1} parent=5 // pred_region
        %s207 = ssub.s32 %s14, 1
        // Predicated region
        $region33: #{tpu_custom_call.1} parent=31 // pred_check
          %p208 = pneg %p59
        $region34: #{tpu_custom_call.1} parent=31 // pred_check_branch
          %210 = sbr.rel (%p208) target = $region36
        $region35: #{tpu_custom_call.1} parent=31 // pred_region
          %211 = dma.done [#allocation3], 64
        $region36: #{tpu_custom_call.1} parent=31 // pred_fallthru
          _
        %s212 = sand.u32 %s74, 1
        %s213 = scalar_lea.sflag [#allocation6], %s212
        %s214 = sand.u32 %s74, 1
        %s215 = smul.addr %s214, 16
        %s216 = scalar_lea.vmem [#allocation5], %s215
        // Predicated region
        $region37: #{tpu_custom_call.1} parent=31 // pred_check
          %p217 = pneg %p87
        $region38: #{tpu_custom_call.1} parent=31 // pred_check_branch
          %219 = sbr.rel (%p217) target = $region40
        $region39: #{tpu_custom_call.1} parent=31 // pred_region
          %220 = dma.done %s213, 256
        $region40: #{tpu_custom_call.1} parent=31 // pred_fallthru
          _
        %p221 = pneg %p59
        %p222 = pneg %p56
        %s223 = sand.u32 %s74, 1
        %s224 = scalar_lea.sflag [#allocation6], %s223
        %s225 = sand.u32 %s74, 1
        %s226 = smul.addr %s225, 16
        %s227 = scalar_lea.vmem [#allocation5], %s226
        %p228 = pneg %p87
        %p229 = pneg %p84
        %p230 = scmp.lt.s32.totalorder %s25, 0
        %s231 = scalar_select %p230, %s25, 0
        %s232 = scalar_lea.vmem %s2, %s231
        %p233 = pneg %p113
        %p234 = pneg %p110
        %p235 = pneg %p141
        %p236 = pneg %p138
        %p237 = scmp.lt.s32.totalorder %s25, 0
        %s238 = scalar_select %p237, %s25, 0
        %s239 = scalar_lea.vmem %s2, %s238
        %p241 = scmp.eq.s32.totalorder %s26, 0
        // Predicated region
        $region41: #{tpu_custom_call.1} parent=31 // pred_check
          %p242 = pneg %p241
        $region42: #{tpu_custom_call.1} parent=31 // pred_check_branch
          %244 = sbr.rel (%p242) target = $region44
        $region43: #{tpu_custom_call.1} parent=31 // pred_region
          %245 = vst [vmem:[#allocation7] sm:$0xff] 0.0
        $region44: #{tpu_custom_call.1} parent=31 // pred_fallthru
          _
        %v246 = vld [vmem:[#allocation7] sm:$0xff]
        %v247 = vld [vmem:[#allocation2] sm:$0xf]
        %v248 = vld [vmem:[%s216] sm:$0xf]
        %v249 = vld [vmem:[%s216 + $0x4] sm:$0xf]
        %v250 = vld [vmem:[%s216 + $0x8] sm:$0xf]
        %v251 = vld [vmem:[%s216 + $0xc] sm:$0xf]
        %v256 = vunpack.c.l.b16 %v248
        %v257 = vunpack.c.l.b16 %v249
        %v258 = vunpack.c.l.b16 %v250
        %v259 = vunpack.c.l.b16 %v251
        %v260 = vpack.c.b16 %v257, %v256
        %v261 = vpack.c.b16 %v259, %v258
        %vm264 = vcmask 261120
        %v266 = vsel %vm264, %v247, 0
        %268 = vmatprep.subr.bf16.mxu0 0
        %269 = vmatpush1.bf16.msra.mxu0 %v260
        %270 = vmatprep.subr.bf16.mxu0 0
        %271 = vmatpush1.bf16.msra.mxu0 %v261
        %272 = vmatprep.subr.bf16.mxu0 0
        %273 = vmatpush1.bf16.msra.mxu0 0
        %274 = vmatprep.subr.bf16.mxu0 0
        %275 = vmatpush1.bf16.msra.mxu0 0
        %276 = vmatprep.subr.bf16.mxu0 0
        %277 = vmatpush1.bf16.msra.mxu0 0
        %278 = vmatprep.subr.bf16.mxu0 0
        %279 = vmatpush1.bf16.msra.mxu0 0
        %280 = vmatprep.subr.bf16.mxu0 0
        %281 = vmatpush1.bf16.msra.mxu0 0
        %282 = vmatprep.subr.bf16.mxu0 0
        %283 = vmatpush1.bf16.msra.mxu0 0
        %284 = vmatprep.subr.bf16.mxu0 0
        %285 = vmatpush1.bf16.msra.mxu0 0
        %286 = vmatprep.subr.bf16.mxu0 0
        %287 = vmatpush1.bf16.msra.mxu0 0
        %288 = vmatprep.subr.bf16.mxu0 0
        %289 = vmatpush1.bf16.msra.mxu0 0
        %290 = vmatprep.subr.bf16.mxu0 0
        %291 = vmatpush1.bf16.msra.mxu0 0
        %292 = vmatprep.subr.bf16.mxu0 0
        %293 = vmatpush1.bf16.msra.mxu0 0
        %294 = vmatprep.subr.bf16.mxu0 0
        %295 = vmatpush1.bf16.msra.mxu0 0
        %296 = vmatprep.subr.bf16.mxu0 0
        %297 = vmatpush1.bf16.msra.mxu0 0
        %298 = vmatprep.subr.bf16.mxu0 0
        %299 = vmatpush1.bf16.msra.mxu0 0
        %300 = vmatprep.mubr.bf16.mxu0 0
        %301 = vmatmul.mubr.bf16.gmra.mrb[0].mxu0 %v266
        %v302 = vpop.f32.mrb[0].mxu0
        %v303 = vadd.f32 0.0, %v302
        %v304 = vpop.f32.mrb[0].mxu0
        %v305 = vpop.f32.mrb[0].mxu0
        %v306 = vpop.f32.mrb[0].mxu0
        %307 = vdwg.mxu0
        %v308 = vadd.f32 %v246, %v303
        %309 = vst [vmem:[#allocation7] sm:$0xff] %v308
        %p310 = scmp.eq.s32.totalorder %s26, 3
        // Predicated region
        $region45: #{tpu_custom_call.1} parent=31 // pred_check
          %p311 = pneg %p310
        $region46: #{tpu_custom_call.1} parent=31 // pred_check_branch
          %313 = sbr.rel (%p311) target = $region48
        $region47: #{tpu_custom_call.1} parent=31 // pred_region
          %v314 = vld [vmem:[#allocation7] sm:$0xff]
          %v315 = vmul.f32 %v314, 0.25
          %v316 = vld [vmem:[%s239] sm:$0x1]
          %v318 = vlaneseq
          %v319 = vshrl.u32 %v318, 7
          %v320 = vsub.s32 0, %v319
          %v321 = vrot.slane %v316, %v320
          %v323 = vadd.f32 %v315, %v321
          %324 = vst [vmem:[#allocation7] sm:$0xff] %v323
        $region48: #{tpu_custom_call.1} parent=31 // pred_fallthru
          _
        // Predicated region
        $region49: #{tpu_custom_call.1} parent=31 // pred_check
          %p325 = pneg %p138
        $region50: #{tpu_custom_call.1} parent=31 // pred_check_branch
          %327 = sbr.rel (%p325) target = $region52
        $region51: #{tpu_custom_call.1} parent=31 // pred_region
          %s329 = ssub.s32 128, 128
          %330 = vsyncadd [#allocation4], %s329
          %s331 = sadd.s32 %s25, %s24
          %s332 = smul.addr %s331, 128
          %s333 = scalar_lea.hbm %s3, %s332
          %s335 = sshll.u32 [#allocation7], 4
          %s336 = int_to_ptr.vmem [resolvable:$true] %s335
          %338 = dma.vmem_to_hbm [thread:$0]  %s336, 128, %s333, [#allocation4]
        $region52: #{tpu_custom_call.1} parent=31 // pred_fallthru
          _
        // Predicated region
        $region53: #{tpu_custom_call.1} parent=31 // pred_check
          %p339 = pneg %p138
        $region54: #{tpu_custom_call.1} parent=31 // pred_check_branch
          %341 = sbr.rel (%p339) target = $region56
        $region55: #{tpu_custom_call.1} parent=31 // pred_region
          %342 = dma.done [#allocation4], 128
        $region56: #{tpu_custom_call.1} parent=31 // pred_fallthru
          _
      $region32: #{tpu_custom_call.1} parent=5 // pred_fallthru
        _
      %p343 = scmp.le.s32.totalorder 2, %s14
      // Predicated region
      $region57: #{tpu_custom_call.1} parent=5 // pred_check
        %p344 = pneg %p343
      $region58: #{tpu_custom_call.1} parent=5 // pred_check_branch
        %346 = sbr.rel (%p344) target = $region60
      $region59: #{tpu_custom_call.1} parent=5 // pred_region
        %s347 = ssub.s32 %s14, 2
      $region60: #{tpu_custom_call.1} parent=5 // pred_fallthru
        _
    $region6: #{tpu_custom_call.1} parent=1 // loop_footer
      %s18 = sadd.s32 1, %s14
    $region7: #{tpu_custom_call.1} parent=1 // loop_footer_branch
      %13 = sbr.rel target = $region3
    $region8: #{tpu_custom_call.1} parent=1 // loop_exit
      _
    %348 = vsyncpa [#allocation3], 1
    %s349 = scalar_lea.sflag [#allocation3], 1
    %350 = vsyncpa %s349, 1
    %351 = vsyncpa [#allocation6], 1
    %s352 = scalar_lea.sflag [#allocation6], 1
    %353 = vsyncpa %s352, 1
    %354 = vsyncpa [#allocation4], 1
    %s355 = scalar_lea.sflag [#allocation4], 1
    %356 = vsyncpa %s355, 1

</llo_original>
